<compile_context>
chip_gen: v7x
topology: tpu7x:2x2x1
jax: 0.10.0
libtpu: 0.0.40
codegen_flags: <defaults>
</compile_context>

<pallas_src>
import functools
import math

import jax
import jax.numpy as jnp
from jax.experimental import pallas as pl
from jax.experimental.pallas import tpu as pltpu


def _mlp_kernel(xT_ref, w0_ref, b0_ref, w1_ref, b1_ref, o_ref, *,
                neg_scale, pos_scale):
    xT = xT_ref[...]                                    # (D_in, TB), batch on lanes

    # Layer 0: hT = tanh(W0 @ xT + b0)  -> (H, TB).  Lane-dense MXU pass (N = TB),
    # f32 accumulation.
    hT = jnp.tanh(
        jnp.dot(w0_ref[...], xT, preferred_element_type=jnp.float32)
        + b0_ref[...]                                   # (H, 1) broadcasts over lanes
    )

    # Layer 1 (H -> 1): VPU multiply + sublane reduction instead of a wasteful
    # N=1 MXU pass (avoids a second MXU dependency chain / result-FIFO pop).
    zT = jnp.sum(hT * w1_ref[...], axis=0, keepdims=True) + b1_ref[...]   # (1, TB)

    t = jnp.tanh(zT)
    scale = jnp.where(zT < 0.0, neg_scale, pos_scale)   # one select + one mul
    o_ref[...] = (t * scale).astype(o_ref.dtype)        # lane-dense (1, TB) store


def asymmetric_mlp1(x, w0, b0, w1, b1, alpha, beta, *, block_b=1024):
    """Forward pass of AsymmetricMLP1.

    x : (B, D_in)      input (PyTorch layout)
    w0: (H, D_in)      hidden0 weight (PyTorch layout)
    b0: (H,)           hidden0 bias
    w1: (1, H)         out weight (PyTorch layout)
    b1: (1,)           out bias
    """
    B, D_in = x.shape
    H = w0.shape[0]

    # Tile the batch.  For small B a single full-array block is used; for large
    # B use a lane-dense tile (multiple of 128) and pad the batch.
    if B <= block_b:
        TB = B
    else:
        TB = block_b
    G = pl.cdiv(B, TB)
    B_pad = G * TB

    xT = x.T                                            # (D_in, B): batch on lanes
    if B_pad != B:
        xT = jnp.pad(xT, ((0, 0), (0, B_pad - B)))

    b0c = b0.reshape(H, 1)                              # broadcasts over lanes
    w1c = w1.reshape(1, H).T                            # (H, 1)
    b1c = b1.reshape(1, 1)

    neg_scale = float(1.0 - 2.0 * alpha)
    pos_scale = float(1.0 - 2.0 * beta)
    kernel = functools.partial(_mlp_kernel,
                               neg_scale=neg_scale, pos_scale=pos_scale)

    cost = pl.CostEstimate(
        flops=2 * B_pad * D_in * H + 4 * B_pad * H + 4 * B_pad,
        transcendentals=B_pad * (H + 1),
        bytes_accessed=4 * (B_pad * D_in + H * D_in + 2 * H + 1 + B_pad),
    )

    out = pl.pallas_call(
        kernel,
        out_shape=jax.ShapeDtypeStruct((1, B_pad), x.dtype),
        grid=(G,),
        in_specs=[
            pl.BlockSpec((D_in, TB), lambda i: (0, i)),   # streamed x tiles
            pl.BlockSpec((H, D_in), lambda i: (0, 0)),    # VMEM-resident weights
            pl.BlockSpec((H, 1), lambda i: (0, 0)),
            pl.BlockSpec((H, 1), lambda i: (0, 0)),
            pl.BlockSpec((1, 1), lambda i: (0, 0)),
        ],
        out_specs=pl.BlockSpec((1, TB), lambda i: (0, i)),  # lane-dense output
        compiler_params=pltpu.CompilerParams(
            dimension_semantics=("parallel",),            # megacore / v7x 2-TC
        ),
        cost_estimate=cost,
    )(xT, w0, b0c, w1c, b1c)

    return out[0, :B].reshape(B, 1)


def xavier_uniform(key, fan_out, fan_in, dtype=jnp.float32):
    # matches torch.nn.init.xavier_uniform_ for a (fan_out, fan_in) weight
    limit = math.sqrt(6.0 / (fan_in + fan_out))
    return jax.random.uniform(key, (fan_out, fan_in), dtype, -limit, limit)


def linear_bias_init(key, fan_in, fan_out, dtype=jnp.float32):
    # matches PyTorch default Linear bias init: U(-1/sqrt(fan_in), 1/sqrt(fan_in))
    bound = 1.0 / math.sqrt(fan_in)
    return jax.random.uniform(key, (fan_out,), dtype, -bound, bound)


if __name__ == "__main__":
    input_size, hidden_size = 16, 32
    batch = 8
    alpha, beta = 0.1, 0.3

    key = jax.random.PRNGKey(0)
    k_x, k_w0, k_b0, k_w1, k_b1 = jax.random.split(key, 5)

    x = jax.random.normal(k_x, (batch, input_size), jnp.float32)

    # PyTorch-shaped params.
    w0 = xavier_uniform(k_w0, hidden_size, input_size)        # (H, D_in)
    b0 = linear_bias_init(k_b0, input_size, hidden_size)      # (H,)
    w1 = xavier_uniform(k_w1, 1, hidden_size)                 # (1, H)
    b1 = linear_bias_init(k_b1, hidden_size, 1)               # (1,)

    y = asymmetric_mlp1(x, w0, b0, w1, b1, alpha, beta)
    jax.block_until_ready(y)

    # Reference check in plain JAX (same math as the PyTorch forward).
    h_ref = jnp.tanh(x @ w0.T + b0)
    z_ref = h_ref @ w1.T + b1
    t_ref = jnp.tanh(z_ref)
    y_ref = jnp.where(z_ref < 0, t_ref * (1 - 2 * alpha), t_ref * (1 - 2 * beta))
    assert y.shape == (batch, 1)
    assert jnp.allclose(y, y_ref, atol=1e-5), "mismatch vs reference"

    print("KERNEL_OK")
</pallas_src>

<mosaic_0001>
module attributes {stable_mosaic.version = 11 : i64} {
  func.func @_mlp_kernel(%arg0: i32, %arg1: memref<16x8xf32, #tpu.memory_space<vmem>>, %arg2: memref<32x16xf32, #tpu.memory_space<vmem>>, %arg3: memref<32x1xf32, #tpu.memory_space<vmem>>, %arg4: memref<32x1xf32, #tpu.memory_space<vmem>>, %arg5: memref<1x1xf32, #tpu.memory_space<vmem>>, %arg6: memref<1x8xf32, #tpu.memory_space<vmem>>) attributes {dimension_semantics = [#tpu.dimension_semantics<parallel>], iteration_bounds = array<i64: 1>, scalar_prefetch = 0 : i64, scratch_operands = 0 : i64, tpu.core_type = #tpu.core_type<tc>, window_params = [{transform_indices = @transform_0, window_bounds = array<i64: 16, 8>}, {pipeline_mode = #tpu.pipeline_mode<synchronous>, transform_indices = @transform_1, window_bounds = array<i64: 32, 16>}, {pipeline_mode = #tpu.pipeline_mode<synchronous>, transform_indices = @transform_2, window_bounds = array<i64: 32, 1>}, {pipeline_mode = #tpu.pipeline_mode<synchronous>, transform_indices = @transform_3, window_bounds = array<i64: 32, 1>}, {pipeline_mode = #tpu.pipeline_mode<synchronous>, transform_indices = @transform_4, window_bounds = array<i64: 1, 1>}, {transform_indices = @transform_5, window_bounds = array<i64: 1, 8>}]} {
    %c0 = arith.constant 0 : index
    %c0_0 = arith.constant 0 : index
    %0 = vector.load %arg1[%c0, %c0_0] : memref<16x8xf32, #tpu.memory_space<vmem>>, vector<16x8xf32>
    %c0_1 = arith.constant 0 : index
    %c0_2 = arith.constant 0 : index
    %1 = vector.load %arg2[%c0_1, %c0_2] : memref<32x16xf32, #tpu.memory_space<vmem>>, vector<32x16xf32>
    %cst = arith.constant dense<0.000000e+00> : vector<32x8xf32>
    %2 = tpu.matmul %1, %0, %cst {dimension_numbers = #tpu.dot_dimension_numbers<[1], [0], [0], [1], [0, 0, 1, 1], [], []>} : vector<32x16xf32>, vector<16x8xf32>, vector<32x8xf32> -> vector<32x8xf32>
    %c0_3 = arith.constant 0 : index
    %c0_4 = arith.constant 0 : index
    %3 = vector.load %arg3[%c0_3, %c0_4] : memref<32x1xf32, #tpu.memory_space<vmem>>, vector<32x1xf32>
    %4 = vector.broadcast %3 : vector<32x1xf32> to vector<32x8xf32>
    %5 = arith.addf %2, %4 : vector<32x8xf32>
    %6 = math.tanh %5 : vector<32x8xf32>
    %c0_5 = arith.constant 0 : index
    %c0_6 = arith.constant 0 : index
    %7 = vector.load %arg4[%c0_5, %c0_6] : memref<32x1xf32, #tpu.memory_space<vmem>>, vector<32x1xf32>
    %8 = vector.broadcast %7 : vector<32x1xf32> to vector<32x8xf32>
    %9 = arith.mulf %6, %8 : vector<32x8xf32>
    %cst_7 = arith.constant dense<0.000000e+00> : vector<8xf32>
    %10 = vector.multi_reduction <add>, %9, %cst_7 [0] : vector<32x8xf32> to vector<8xf32>
    %11 = vector.shape_cast %10 : vector<8xf32> to vector<1x8xf32>
    %c0_8 = arith.constant 0 : index
    %c0_9 = arith.constant 0 : index
    %12 = vector.load %arg5[%c0_8, %c0_9] : memref<1x1xf32, #tpu.memory_space<vmem>>, vector<1x1xf32>
    %13 = vector.broadcast %12 : vector<1x1xf32> to vector<1x8xf32>
    %14 = arith.addf %11, %13 : vector<1x8xf32>
    %15 = math.tanh %14 : vector<1x8xf32>
    %cst_10 = arith.constant 0.000000e+00 : f32
    %16 = vector.broadcast %cst_10 : f32 to vector<1x8xf32>
    %17 = arith.cmpf olt, %14, %16 : vector<1x8xf32>
    %cst_11 = arith.constant 8.000000e-01 : f32
    %cst_12 = arith.constant 4.000000e-01 : f32
    %18 = vector.broadcast %cst_11 : f32 to vector<1x8xf32>
    %19 = vector.broadcast %cst_12 : f32 to vector<1x8xf32>
    %20 = arith.select %17, %18, %19 : vector<1x8xi1>, vector<1x8xf32>
    %21 = arith.mulf %15, %20 : vector<1x8xf32>
    %c0_13 = arith.constant 0 : index
    %c0_14 = arith.constant 0 : index
    %22 = vector.load %arg6[%c0_13, %c0_14] : memref<1x8xf32, #tpu.memory_space<vmem>>, vector<1x8xf32>
    tpu.vector_store %arg6[%c0_13, %c0_14], %21 {strides = array<i32>} : memref<1x8xf32, #tpu.memory_space<vmem>>, vector<1x8xf32>,
    return
  }
  func.func @transform_0(%arg0: i32) -> (i32, i32) {
    %c0_i32 = arith.constant 0 : i32
    %c0_i32_0 = arith.constant 0 : i32
    return %c0_i32, %arg0 : i32, i32
  }
  func.func @transform_1(%arg0: i32) -> (i32, i32) {
    %c0_i32 = arith.constant 0 : i32
    %c0_i32_0 = arith.constant 0 : i32
    %c0_i32_1 = arith.constant 0 : i32
    return %c0_i32, %c0_i32_0 : i32, i32
  }
  func.func @transform_2(%arg0: i32) -> (i32, i32) {
    %c0_i32 = arith.constant 0 : i32
    %c0_i32_0 = arith.constant 0 : i32
    %c0_i32_1 = arith.constant 0 : i32
    return %c0_i32, %c0_i32_0 : i32, i32
  }
  func.func @transform_3(%arg0: i32) -> (i32, i32) {
    %c0_i32 = arith.constant 0 : i32
    %c0_i32_0 = arith.constant 0 : i32
    %c0_i32_1 = arith.constant 0 : i32
    return %c0_i32, %c0_i32_0 : i32, i32
  }
  func.func @transform_4(%arg0: i32) -> (i32, i32) {
    %c0_i32 = arith.constant 0 : i32
    %c0_i32_0 = arith.constant 0 : i32
    %c0_i32_1 = arith.constant 0 : i32
    return %c0_i32, %c0_i32_0 : i32, i32
  }
  func.func @transform_5(%arg0: i32) -> (i32, i32) {
    %c0_i32 = arith.constant 0 : i32
    %c0_i32_0 = arith.constant 0 : i32
    return %c0_i32, %arg0 : i32, i32
  }
}

</mosaic_0001>

<llo_original>
// kernel: tpu_custom_call.1
$region0: #{tpu_custom_call.1}
  #allocation0 [shape = 'u32[]', space=smem, size = 0x4, offset = 0x4, fixed_abs, tag = 'smem constant byte address 0x4 - core index']
  #allocation1 [shape = 'u32[144,128]{1,0:T(1,128)}', space=vmem, size = 0x12000, scoped, tag = 'internal scratch']
  #allocation2 [shape = 'f32[1,1]{1,0:T(1,128)S(1)}', space=vmem, size = 0x200, scoped, tag = 'scoped memory for tpu_custom_call.1']
  %s0 = inlined_call_operand.vmem [shape: f32[16,8], index: 0, kind: input, shape index: {}]
  %s1 = inlined_call_operand.vmem [shape: f32[32,16], index: 1, kind: input, shape index: {}]
  %s2 = inlined_call_operand.vmem [shape: f32[32,1], index: 2, kind: input, shape index: {}]
  %s3 = inlined_call_operand.vmem [shape: f32[32,1], index: 3, kind: input, shape index: {}]
  %s4 = inlined_call_operand.<no memory space> [shape: f32[1,1], index: 4, kind: input, shape index: {}]
  %s5 = inlined_call_operand.hbm [shape: f32[1,8], index: 5, kind: output, shape index: {}]
  %s6 = sld [smem:[#allocation0]]
  $region30: #{tpu_custom_call.1} parent=0
    _
  %s8 = ssub.s32 1, %s6
  %s9 = scalar_select 0, %s8, %s6
  %v10 = vstv %s4
  %11 = vst [vmem:[#allocation2] sm:$0x1] %v10
  $region1: #{tpu_custom_call.1} parent=0
    #allocation3 [shape = 'u8[512]{0}', space=vmem, size = 0x400, scoped, tag = 'output window, operand 0, single buffered']
    #allocation4 [shape = 's32[1]{0}', space=sflag, size = 0x4, scoped, tag = 'scoped memory for tpu_custom_call.1']
    %12 = vsyncpa [#allocation4], 0
    // Predicated region
    $region2: #{tpu_custom_call.1} parent=1 // pred_check
      _
    $region3: #{tpu_custom_call.1} parent=1 // pred_check_branch
      %14 = sbr.rel (0) target = $region5
    $region4: #{tpu_custom_call.1} parent=1 // pred_region
      _
    $region5: #{tpu_custom_call.1} parent=1 // pred_fallthru
      _
    // Predicated region
    $region6: #{tpu_custom_call.1} parent=1 // pred_check
      _
    $region7: #{tpu_custom_call.1} parent=1 // pred_check_branch
      %16 = sbr.rel (0) target = $region9
    $region8: #{tpu_custom_call.1} parent=1 // pred_region
      _
    $region9: #{tpu_custom_call.1} parent=1 // pred_fallthru
      _
    // Predicated region
    $region10: #{tpu_custom_call.1} parent=1 // pred_check
      _
    $region11: #{tpu_custom_call.1} parent=1 // pred_check_branch
      %18 = sbr.rel (0) target = $region13
    $region12: #{tpu_custom_call.1} parent=1 // pred_region
      _
    $region13: #{tpu_custom_call.1} parent=1 // pred_fallthru
      _
    // Predicated region
    $region14: #{tpu_custom_call.1} parent=1 // pred_check
      _
    $region15: #{tpu_custom_call.1} parent=1 // pred_check_branch
      %20 = sbr.rel (0) target = $region17
    $region16: #{tpu_custom_call.1} parent=1 // pred_region
      _
    $region17: #{tpu_custom_call.1} parent=1 // pred_fallthru
      _
    // Predicated region
    $region18: #{tpu_custom_call.1} parent=1 // pred_check
      _
    $region19: #{tpu_custom_call.1} parent=1 // pred_check_branch
      %22 = sbr.rel (0) target = $region21
    $region20: #{tpu_custom_call.1} parent=1 // pred_region
      _
    $region21: #{tpu_custom_call.1} parent=1 // pred_fallthru
      _
    %v23 = vld [vmem:[%s0] sm:$0xff]
    %v24 = vld [vmem:[%s0 + $0x8] sm:$0xff]
    %v25 = vld [vmem:[%s1] sm:$0xff]
    %v26 = vld [vmem:[%s1 + $0x8] sm:$0xff]
    %v27 = vld [vmem:[%s1 + $0x10] sm:$0xff]
    %v28 = vld [vmem:[%s1 + $0x18] sm:$0xff]
    %v29 = vld [vmem:[%s2] sm:$0xff]
    %v30 = vld [vmem:[%s2 + $0x8] sm:$0xff]
    %v31 = vld [vmem:[%s2 + $0x10] sm:$0xff]
    %v32 = vld [vmem:[%s2 + $0x18] sm:$0xff]
    %34 = vset.pattern.permute.xlu0 0
    %35 = vperm.xlu0 %34, %v29
    %v36 = vpop.permute.xlu0 %35
    %39 = vset.pattern.permute.xlu0 0
    %40 = vperm.xlu0 %39, %v30
    %v41 = vpop.permute.xlu0 %40
    %44 = vset.pattern.permute.xlu0 0
    %45 = vperm.xlu0 %44, %v31
    %v46 = vpop.permute.xlu0 %45
    %49 = vset.pattern.permute.xlu0 0
    %50 = vperm.xlu0 %49, %v32
    %v51 = vpop.permute.xlu0 %50
    %vm53 = vcmask 130048
    %v55 = vsel %vm53, %v25, 0
    %v58 = vsel %vm53, %v26, 0
    %v61 = vsel %vm53, %v27, 0
    %v64 = vsel %vm53, %v28, 0
    %66 = vmatprep.subr.mxu0 0.0
    %67 = vmatpush1.msra.mxu0 %v23
    %68 = vmatprep.subr.mxu0 0.0
    %69 = vmatpush1.msra.mxu0 %v24
    %70 = vmatprep.subr.mxu0 0.0
    %71 = vmatpush1.msra.mxu0 0.0
    %72 = vmatprep.subr.mxu0 0.0
    %73 = vmatpush1.msra.mxu0 0.0
    %74 = vmatprep.subr.mxu0 0.0
    %75 = vmatpush1.msra.mxu0 0.0
    %76 = vmatprep.subr.mxu0 0.0
    %77 = vmatpush1.msra.mxu0 0.0
    %78 = vmatprep.subr.mxu0 0.0
    %79 = vmatpush1.msra.mxu0 0.0
    %80 = vmatprep.subr.mxu0 0.0
    %81 = vmatpush1.msra.mxu0 0.0
    %82 = vmatprep.subr.mxu0 0.0
    %83 = vmatpush1.msra.mxu0 0.0
    %84 = vmatprep.subr.mxu0 0.0
    %85 = vmatpush1.msra.mxu0 0.0
    %86 = vmatprep.subr.mxu0 0.0
    %87 = vmatpush1.msra.mxu0 0.0
    %88 = vmatprep.subr.mxu0 0.0
    %89 = vmatpush1.msra.mxu0 0.0
    %90 = vmatprep.subr.mxu0 0.0
    %91 = vmatpush1.msra.mxu0 0.0
    %92 = vmatprep.subr.mxu0 0.0
    %93 = vmatpush1.msra.mxu0 0.0
    %94 = vmatprep.subr.mxu0 0.0
    %95 = vmatpush1.msra.mxu0 0.0
    %96 = vmatprep.subr.mxu0 0.0
    %97 = vmatpush1.msra.mxu0 0.0
    %98 = vmatprep.subr.mxu0 0.0
    %99 = vmatpush1.msra.mxu0 0.0
    %100 = vmatprep.subr.mxu0 0.0
    %101 = vmatpush1.msra.mxu0 0.0
    %102 = vmatprep.subr.mxu0 0.0
    %103 = vmatpush1.msra.mxu0 0.0
    %104 = vmatprep.subr.mxu0 0.0
    %105 = vmatpush1.msra.mxu0 0.0
    %106 = vmatprep.subr.mxu0 0.0
    %107 = vmatpush1.msra.mxu0 0.0
    %108 = vmatprep.subr.mxu0 0.0
    %109 = vmatpush1.msra.mxu0 0.0
    %110 = vmatprep.subr.mxu0 0.0
    %111 = vmatpush1.msra.mxu0 0.0
    %112 = vmatprep.subr.mxu0 0.0
    %113 = vmatpush1.msra.mxu0 0.0
    %114 = vmatprep.subr.mxu0 0.0
    %115 = vmatpush1.msra.mxu0 0.0
    %116 = vmatprep.subr.mxu0 0.0
    %117 = vmatpush1.msra.mxu0 0.0
    %118 = vmatprep.subr.mxu0 0.0
    %119 = vmatpush1.msra.mxu0 0.0
    %120 = vmatprep.subr.mxu0 0.0
    %121 = vmatpush1.msra.mxu0 0.0
    %122 = vmatprep.subr.mxu0 0.0
    %123 = vmatpush1.msra.mxu0 0.0
    %124 = vmatprep.subr.mxu0 0.0
    %125 = vmatpush1.msra.mxu0 0.0
    %126 = vmatprep.subr.mxu0 0.0
    %127 = vmatpush1.msra.mxu0 0.0
    %128 = vmatprep.subr.mxu0 0.0
    %129 = vmatpush1.msra.mxu0 0.0
    %130 = vmatprep.mubr.f32.mxu0 0.0
    %131 = vmatmul.mubr.f32.gmra.mrb[0].mxu0 %v55
    %v132 = vpop.f32.mrb[0].mxu0
    %v133 = vadd.f32 %v36, %v132
    %v134 = vpop.f32.mrb[0].mxu0
    %135 = vmatprep.mubr.f32.mxu0 0.0
    %136 = vmatmul.mubr.f32.gmra.mrb[0].mxu0 %v58
    %v137 = vpop.f32.mrb[0].mxu0
    %v138 = vadd.f32 %v41, %v137
    %v139 = vpop.f32.mrb[0].mxu0
    %140 = vmatprep.mubr.f32.mxu0 0.0
    %141 = vmatmul.mubr.f32.gmra.mrb[0].mxu0 %v61
    %v142 = vpop.f32.mrb[0].mxu0
    %v143 = vadd.f32 %v46, %v142
    %v144 = vpop.f32.mrb[0].mxu0
    %145 = vmatprep.mubr.f32.mxu0 0.0
    %146 = vmatmul.mubr.f32.gmra.mrb[0].mxu0 %v64
    %v147 = vpop.f32.mrb[0].mxu0
    %v148 = vadd.f32 %v51, %v147
    %v149 = vpop.f32.mrb[0].mxu0
    %150 = vdwg.mxu0
    %v151 = vtanh.pop %v133
    %v152 = vtanh.pop %v138
    %v153 = vtanh.pop %v143
    %v154 = vtanh.pop %v148
    %v155 = vld [vmem:[%s3] sm:$0xff]
    %v156 = vld [vmem:[%s3 + $0x8] sm:$0xff]
    %v157 = vld [vmem:[%s3 + $0x10] sm:$0xff]
    %v158 = vld [vmem:[%s3 + $0x18] sm:$0xff]
    %160 = vset.pattern.permute.xlu0 0
    %161 = vperm.xlu0 %160, %v155
    %v162 = vpop.permute.xlu0 %161
    %165 = vset.pattern.permute.xlu0 0
    %166 = vperm.xlu0 %165, %v156
    %v167 = vpop.permute.xlu0 %166
    %170 = vset.pattern.permute.xlu0 0
    %171 = vperm.xlu0 %170, %v157
    %v172 = vpop.permute.xlu0 %171
    %175 = vset.pattern.permute.xlu0 0
    %176 = vperm.xlu0 %175, %v158
    %v177 = vpop.permute.xlu0 %176
    %v179 = vmul.f32 %v151, %v162
    %v180 = vmul.f32 %v152, %v167
    %v181 = vmul.f32 %v153, %v172
    %v182 = vmul.f32 %v154, %v177
    %vm183 = vcmask 64512
    %v184 = vsel %vm183, %v179, 0.0
    %v185 = vsel %vm183, %v180, 0.0
    %v186 = vadd.f32 %v184, %v185
    %v187 = vsel %vm183, %v181, 0.0
    %v188 = vadd.f32 %v186, %v187
    %v189 = vsel %vm183, %v182, 0.0
    %v190 = vadd.f32 %v188, %v189
    %v191 = vrot.slane %v190, 4
    %v192 = vadd.f32 %v190, %v191
    %v193 = vrot.slane %v192, 2
    %v194 = vadd.f32 %v192, %v193
    %v195 = vrot.slane %v194, 1
    %v196 = vadd.f32 %v194, %v195
    %v197 = vld [vmem:[#allocation2] sm:$0x1]
    %199 = vset.pattern.permute.xlu0 0
    %200 = vperm.xlu0 %199, %v197
    %v201 = vpop.permute.xlu0 %200
    %v203 = vlaneseq
    %v204 = vshrl.u32 %v203, 7
    %v205 = vsub.s32 0, %v204
    %v206 = vrot.slane %v201, %v205
    %v207 = vadd.f32 %v196, %v206
    %v208 = vtanh.pop %v207
    %vm209 = vcmp.lt.f32.partialorder %v207, 0.0
    %v210 = vsel %vm209, 0.8, 0.4
    %v211 = vmul.f32 %v208, %v210
    %vm212 = vcmask 57344
    %213 = vst.msk [vmem:[#allocation3] sm:$0x1] %vm212, %v211
    // Predicated region
    $region22: #{tpu_custom_call.1} parent=1 // pred_check
      _
    $region23: #{tpu_custom_call.1} parent=1 // pred_check_branch
      %215 = sbr.rel (0) target = $region25
    $region24: #{tpu_custom_call.1} parent=1 // pred_region
      %s217 = ssub.s32 16, 16
      %218 = vsyncadd [#allocation4], %s217
      %s220 = sshll.u32 [#allocation3], 4
      %s221 = int_to_ptr.vmem [resolvable:$true] %s220
      %223 = dma.vmem_to_hbm [thread:$0]  %s221, 16, %s5, [#allocation4]
    $region25: #{tpu_custom_call.1} parent=1 // pred_fallthru
      _
    // Predicated region
    $region26: #{tpu_custom_call.1} parent=1 // pred_check
      _
    $region27: #{tpu_custom_call.1} parent=1 // pred_check_branch
      %225 = sbr.rel (0) target = $region29
    $region28: #{tpu_custom_call.1} parent=1 // pred_region
      %226 = dma.done [#allocation4], 16
    $region29: #{tpu_custom_call.1} parent=1 // pred_fallthru
      _
    %227 = vsyncpa [#allocation4], 1

</llo_original>
